<compile_context>
chip_gen: v7x
topology: tpu7x:2x2x1
jax: 0.10.0
libtpu: 0.0.40
codegen_flags: <defaults>
</compile_context>

<pallas_src>
import functools

import jax
import jax.numpy as jnp
from jax import lax
from jax.experimental import pallas as pl
from jax.experimental.pallas import tpu as pltpu


def _round_up(x, m):
    return ((x + m - 1) // m) * m


def calculate_memory_reduction(weight_shape, nbits_w):
    """Host-side bookkeeping from the original module (pure Python, no kernel work)."""
    nelem = 1
    for d in weight_shape:
        nelem *= int(d)
    original_mem = nelem * 32
    quantized_mem = nelem * nbits_w
    reduction_percent = 100.0 * (1.0 - quantized_mem / original_mem)
    compression_ratio = original_mem / quantized_mem
    return original_mem, quantized_mem, reduction_percent, compression_ratio


# ---------------------------------------------------------------------------
# Fused kernel: fake-quantize the (tk, tn) weight tile in-register, then
#   acc += x_tile @ wq_tile   (K reduction on grid axis 2, f32 accumulator)
#   out  = acc + bias         (on the last K step)
# ---------------------------------------------------------------------------
def _fused_linear_lsq_kernel(scale_ref, zp_ref, x_ref, wt_ref, b_ref, o_ref,
                             acc_ref, *, qmin, qmax, mxu_dtype):
    @pl.when(pl.program_id(2) == 0)
    def _():
        acc_ref[...] = jnp.zeros_like(acc_ref)

    scale = scale_ref[0, 0]
    zp = zp_ref[0, 0]

    # Same formulation as torch: divide, round-half-to-even, clamp, dequantize.
    w = wt_ref[...]
    q = jnp.clip(jnp.round(w / scale + zp), qmin, qmax)
    wq = (q - zp) * scale

    x = x_ref[...]
    if mxu_dtype is not None:  # optional bf16 MXU feed (faster, small numeric drift)
        x = x.astype(mxu_dtype)
        wq = wq.astype(mxu_dtype)

    # (tm, tk) x (tk, tn): contraction on the RHS sublane dim -> no per-step
    # transpose before the MXU.
    acc_ref[...] += lax.dot_general(
        x, wq,
        dimension_numbers=(((1,), (0,)), ((), ())),
        preferred_element_type=jnp.float32,
    )

    @pl.when(pl.program_id(2) == pl.num_programs(2) - 1)
    def _():
        o_ref[...] = (acc_ref[...] + b_ref[...]).astype(o_ref.dtype)


# ---------------------------------------------------------------------------
# Wrapper
# ---------------------------------------------------------------------------
def linear_lsq_forward(x, weight, bias, nbits_w, *, tm=512, tn=512, tk=512,
                       mxu_dtype=None):
    """LinearLSQ forward. x: (..., K); weight: (N, K); bias: (N,)."""
    N, K = weight.shape
    orig_shape = x.shape
    x2 = x.reshape(-1, K)
    # torch does all math in f32; only cast (a full HBM copy) if actually needed.
    if x2.dtype != jnp.float32:
        x2 = x2.astype(jnp.float32)
    M = x2.shape[0]

    qmin = float(-(2 ** (nbits_w - 1)))
    qmax = float(2 ** (nbits_w - 1) - 1)

    w_f32 = weight if weight.dtype == jnp.float32 else weight.astype(jnp.float32)
    b_f32 = bias if bias.dtype == jnp.float32 else bias.astype(jnp.float32)

    # --- quantization parameters from the *unpadded* weight (trivial mem-bound
    # reduction; plain XLA, matches torch exactly) --------------------------------
    wmin = jnp.min(w_f32)
    wmax = jnp.max(w_f32)
    scale = jnp.maximum((wmax - wmin) / (qmax - qmin), jnp.float32(1e-8))
    zero_point = qmin - wmin / scale
    scale_arr = scale.reshape(1, 1)
    zp_arr = zero_point.reshape(1, 1)

    # --- tile sizes (MXU / (8,128)-friendly), clamped for small shapes ------------
    M_pad = _round_up(M, 8)
    tm = min(tm, M_pad)
    M_pad = _round_up(M_pad, tm)

    N_pad = _round_up(N, 128)
    tn = min(tn, N_pad)
    N_pad = _round_up(N_pad, tn)

    K_pad = _round_up(K, 128)
    tk = min(tk, K_pad)
    K_pad = _round_up(K_pad, tk)

    # Decode-style shapes: keep >=2 parallel grid steps so v7x's 2nd core runs.
    if M_pad // tm == 1 and N_pad // tn == 1 and N_pad >= 256 and N_pad % 256 == 0:
        tn = N_pad // 2

    # --- pad only when required (each pad/transpose is a one-time O(size) copy) ---
    if (M_pad, K_pad) != (M, K):
        x_p = jnp.pad(x2, ((0, M_pad - M), (0, K_pad - K)))   # zero pad: safe for K
    else:
        x_p = x2

    w_t = w_f32.T                                             # one-time (K, N) layout
    if (K_pad, N_pad) != (K, N):
        w_t = jnp.pad(w_t, ((0, K_pad - K), (0, N_pad - N)))

    b_p = (b_f32 if N_pad == N else jnp.pad(b_f32, (0, N_pad - N))).reshape(1, N_pad)

    grid = (M_pad // tm, N_pad // tn, K_pad // tk)

    out_p = pl.pallas_call(
        functools.partial(_fused_linear_lsq_kernel,
                          qmin=qmin, qmax=qmax, mxu_dtype=mxu_dtype),
        out_shape=jax.ShapeDtypeStruct((M_pad, N_pad), x.dtype),
        grid_spec=pltpu.PrefetchScalarGridSpec(
            num_scalar_prefetch=0,
            grid=grid,
            in_specs=[
                pl.BlockSpec(memory_space=pltpu.MemorySpace.SMEM),   # scale (1,1)
                pl.BlockSpec(memory_space=pltpu.MemorySpace.SMEM),   # zero_point (1,1)
                pl.BlockSpec((tm, tk), lambda i, j, k: (i, k)),      # x tile
                pl.BlockSpec((tk, tn), lambda i, j, k: (k, j)),      # w^T tile (K,N)
                pl.BlockSpec((1, tn), lambda i, j, k: (0, j)),       # bias tile
            ],
            out_specs=pl.BlockSpec((tm, tn), lambda i, j, k: (i, j)),
            scratch_shapes=[pltpu.VMEM((tm, tn), jnp.float32)],
        ),
        compiler_params=pltpu.CompilerParams(
            dimension_semantics=("parallel", "parallel", "arbitrary"),
        ),
    )(scale_arr, zp_arr, x_p, w_t, b_p)

    out = out_p[:M, :N]
    return out.reshape(orig_shape[:-1] + (N,))


# ---------------------------------------------------------------------------
# Pure-JAX reference (mirrors the PyTorch forward) for the correctness check.
# ---------------------------------------------------------------------------
def _ref_forward(x, w, b, nbits):
    qmin = -(2.0 ** (nbits - 1))
    qmax = 2.0 ** (nbits - 1) - 1
    mn, mx = w.min(), w.max()
    scale = jnp.maximum((mx - mn) / (qmax - qmin), 1e-8)
    zp = qmin - mn / scale
    q = jnp.clip(jnp.round(w / scale + zp), qmin, qmax)
    wq = (q - zp) * scale
    return x @ wq.T + b


if __name__ == "__main__":
    key = jax.random.PRNGKey(0)
    kx, kw, kb = jax.random.split(key, 3)

    batch, seq, in_features, out_features = 2, 8, 32, 32
    nbits_w = 4

    x = jax.random.normal(kx, (batch, seq, in_features), dtype=jnp.float32)
    bound = 1.0 / (in_features ** 0.5)
    weight = jax.random.uniform(
        kw, (out_features, in_features), jnp.float32, minval=-bound, maxval=bound
    )
    bias = jax.random.uniform(
        kb, (out_features,), jnp.float32, minval=-bound, maxval=bound
    )

    out = linear_lsq_forward(x, weight, bias, nbits_w)
    out = jax.block_until_ready(out)

    expected = _ref_forward(x, weight, bias, nbits_w)
    assert out.shape == (batch, seq, out_features)
    assert jnp.allclose(out, expected, atol=1e-5, rtol=1e-5), "mismatch vs reference"

    # Host-side bookkeeping from the module (no kernel work).
    _ = calculate_memory_reduction(weight.shape, nbits_w)

    print("KERNEL_OK")
</pallas_src>

<mosaic_0001>
module attributes {stable_mosaic.version = 11 : i64} {
  func.func @_fused_linear_lsq_kernel(%arg0: i32, %arg1: i32, %arg2: i32, %arg3: memref<1x1xf32, #tpu.memory_space<smem>>, %arg4: memref<1x1xf32, #tpu.memory_space<smem>>, %arg5: memref<16x128xf32, #tpu.memory_space<vmem>>, %arg6: memref<128x128xf32, #tpu.memory_space<vmem>>, %arg7: memref<1x128xf32, #tpu.memory_space<vmem>>, %arg8: memref<16x128xf32, #tpu.memory_space<vmem>>, %arg9: memref<16x128xf32, #tpu.memory_space<vmem>>) attributes {dimension_semantics = [#tpu.dimension_semantics<parallel>, #tpu.dimension_semantics<parallel>, #tpu.dimension_semantics<arbitrary>], iteration_bounds = array<i64: 1, 1, 1>, scalar_prefetch = 0 : i64, scratch_operands = 1 : i64, tpu.core_type = #tpu.core_type<tc>, window_params = [{transform_indices = @transform_0, window_bounds = array<i64: 1, 1>}, {transform_indices = @transform_1, window_bounds = array<i64: 1, 1>}, {transform_indices = @transform_2, window_bounds = array<i64: 16, 128>}, {transform_indices = @transform_3, window_bounds = array<i64: 128, 128>}, {transform_indices = @transform_4, window_bounds = array<i64: 1, 128>}, {transform_indices = @transform_5, window_bounds = array<i64: 16, 128>}]} {
    %c0_i32 = arith.constant 0 : i32
    %0 = arith.cmpi eq, %arg2, %c0_i32 : i32
    %1 = arith.extui %0 : i1 to i32
    %c0_i32_0 = arith.constant 0 : i32
    %2 = arith.cmpi ne, %1, %c0_i32_0 : i32
    scf.if %2 {
      %cst_16 = arith.constant 0.000000e+00 : f32
      %27 = vector.broadcast %cst_16 : f32 to vector<16x128xf32>
      %c0_17 = arith.constant 0 : index
      %c0_18 = arith.constant 0 : index
      %28 = vector.load %arg9[%c0_17, %c0_18] : memref<16x128xf32, #tpu.memory_space<vmem>>, vector<16x128xf32>
      tpu.vector_store %arg9[%c0_17, %c0_18], %27 {strides = array<i32>} : memref<16x128xf32, #tpu.memory_space<vmem>>, vector<16x128xf32>,
    } else {
    }
    %c0 = arith.constant 0 : index
    %c0_1 = arith.constant 0 : index
    %3 = memref.load %arg3[%c0, %c0_1] : memref<1x1xf32, #tpu.memory_space<smem>>
    %c0_2 = arith.constant 0 : index
    %c0_3 = arith.constant 0 : index
    %4 = memref.load %arg4[%c0_2, %c0_3] : memref<1x1xf32, #tpu.memory_space<smem>>
    %c0_4 = arith.constant 0 : index
    %c0_5 = arith.constant 0 : index
    %5 = vector.load %arg6[%c0_4, %c0_5] : memref<128x128xf32, #tpu.memory_space<vmem>>, vector<128x128xf32>
    %6 = vector.broadcast %3 : f32 to vector<128x128xf32>
    %7 = arith.divf %5, %6 : vector<128x128xf32>
    %8 = vector.broadcast %4 : f32 to vector<128x128xf32>
    %9 = arith.addf %7, %8 : vector<128x128xf32>
    %10 = math.roundeven %9 : vector<128x128xf32>
    %cst = arith.constant -8.000000e+00 : f32
    %cst_6 = arith.constant 7.000000e+00 : f32
    %11 = vector.broadcast %cst : f32 to vector<128x128xf32>
    %12 = arith.maximumf %11, %10 : vector<128x128xf32>
    %13 = vector.broadcast %cst_6 : f32 to vector<128x128xf32>
    %14 = arith.minimumf %13, %12 : vector<128x128xf32>
    %15 = vector.broadcast %4 : f32 to vector<128x128xf32>
    %16 = arith.subf %14, %15 : vector<128x128xf32>
    %17 = vector.broadcast %3 : f32 to vector<128x128xf32>
    %18 = arith.mulf %16, %17 : vector<128x128xf32>
    %c0_7 = arith.constant 0 : index
    %c0_8 = arith.constant 0 : index
    %19 = vector.load %arg5[%c0_7, %c0_8] : memref<16x128xf32, #tpu.memory_space<vmem>>, vector<16x128xf32>
    %c0_9 = arith.constant 0 : index
    %c0_10 = arith.constant 0 : index
    %20 = vector.load %arg9[%c0_9, %c0_10] : memref<16x128xf32, #tpu.memory_space<vmem>>, vector<16x128xf32>
    %cst_11 = arith.constant dense<0.000000e+00> : vector<16x128xf32>
    %21 = tpu.matmul %19, %18, %cst_11 {dimension_numbers = #tpu.dot_dimension_numbers<[1], [0], [0], [1], [0, 0, 1, 1], [], []>} : vector<16x128xf32>, vector<128x128xf32>, vector<16x128xf32> -> vector<16x128xf32>
    %22 = arith.addf %20, %21 : vector<16x128xf32>
    %c0_12 = arith.constant 0 : index
    %c0_13 = arith.constant 0 : index
    %23 = vector.load %arg9[%c0_12, %c0_13] : memref<16x128xf32, #tpu.memory_space<vmem>>, vector<16x128xf32>
    tpu.vector_store %arg9[%c0_12, %c0_13], %22 {strides = array<i32>} : memref<16x128xf32, #tpu.memory_space<vmem>>, vector<16x128xf32>,
    %c0_i32_14 = arith.constant 0 : i32
    %24 = arith.cmpi eq, %arg2, %c0_i32_14 : i32
    %25 = arith.extui %24 : i1 to i32
    %c0_i32_15 = arith.constant 0 : i32
    %26 = arith.cmpi ne, %25, %c0_i32_15 : i32
    scf.if %26 {
      %c0_16 = arith.constant 0 : index
      %c0_17 = arith.constant 0 : index
      %27 = vector.load %arg9[%c0_16, %c0_17] : memref<16x128xf32, #tpu.memory_space<vmem>>, vector<16x128xf32>
      %c0_18 = arith.constant 0 : index
      %c0_19 = arith.constant 0 : index
      %28 = vector.load %arg7[%c0_18, %c0_19] : memref<1x128xf32, #tpu.memory_space<vmem>>, vector<1x128xf32>
      %29 = vector.broadcast %28 : vector<1x128xf32> to vector<16x128xf32>
      %30 = arith.addf %27, %29 : vector<16x128xf32>
      %c0_20 = arith.constant 0 : index
      %c0_21 = arith.constant 0 : index
      %31 = vector.load %arg8[%c0_20, %c0_21] : memref<16x128xf32, #tpu.memory_space<vmem>>, vector<16x128xf32>
      tpu.vector_store %arg8[%c0_20, %c0_21], %30 {strides = array<i32>} : memref<16x128xf32, #tpu.memory_space<vmem>>, vector<16x128xf32>,
    } else {
    }
    return
  }
  func.func @transform_0(%arg0: i32, %arg1: i32, %arg2: i32) -> (i32, i32) {
    %c0_i32 = arith.constant 0 : i32
    %c0_i32_0 = arith.constant 0 : i32
    %c0_i32_1 = arith.constant 0 : i32
    return %c0_i32, %c0_i32_0 : i32, i32
  }
  func.func @transform_1(%arg0: i32, %arg1: i32, %arg2: i32) -> (i32, i32) {
    %c0_i32 = arith.constant 0 : i32
    %c0_i32_0 = arith.constant 0 : i32
    %c0_i32_1 = arith.constant 0 : i32
    return %c0_i32, %c0_i32_0 : i32, i32
  }
  func.func @transform_2(%arg0: i32, %arg1: i32, %arg2: i32) -> (i32, i32) {
    %c0_i32 = arith.constant 0 : i32
    return %arg0, %arg2 : i32, i32
  }
  func.func @transform_3(%arg0: i32, %arg1: i32, %arg2: i32) -> (i32, i32) {
    %c0_i32 = arith.constant 0 : i32
    return %arg2, %arg1 : i32, i32
  }
  func.func @transform_4(%arg0: i32, %arg1: i32, %arg2: i32) -> (i32, i32) {
    %c0_i32 = arith.constant 0 : i32
    %c0_i32_0 = arith.constant 0 : i32
    return %c0_i32, %arg1 : i32, i32
  }
  func.func @transform_5(%arg0: i32, %arg1: i32, %arg2: i32) -> (i32, i32) {
    %c0_i32 = arith.constant 0 : i32
    return %arg0, %arg1 : i32, i32
  }
}

</mosaic_0001>

<llo_original>
// kernel: tpu_custom_call.1
$region0: #{tpu_custom_call.1}
  #allocation0 [shape = 'u32[]', space=smem, size = 0x4, offset = 0x4, fixed_abs, tag = 'smem constant byte address 0x4 - core index']
  #allocation1 [shape = 'u32[144,128]{1,0:T(1,128)}', space=vmem, size = 0x12000, scoped, tag = 'internal scratch']
  #allocation2 [shape = 'f32[16,128]{1,0:T(8,128)}', space=vmem, size = 0x2000, scoped, tag = 'scratch operand']
  #allocation3 [shape = 'f32[1,1]{1,0:T(1,128)S(6)}', space=smem, size = 0x200, scoped, tag = 'scoped memory for tpu_custom_call.1']
  #allocation4 [shape = 'f32[1,1]{1,0:T(1,128)S(6)}', space=smem, size = 0x200, scoped, tag = 'scoped memory for tpu_custom_call.1']
  %s0 = inlined_call_operand.<no memory space> [shape: f32[1,1], index: 0, kind: input, shape index: {}]
  %s1 = inlined_call_operand.<no memory space> [shape: f32[1,1], index: 1, kind: input, shape index: {}]
  %s2 = inlined_call_operand.hbm [shape: f32[16,128], index: 2, kind: input, shape index: {}]
  %s3 = inlined_call_operand.hbm [shape: f32[128,128], index: 3, kind: input, shape index: {}]
  %s4 = inlined_call_operand.vmem [shape: f32[1,128], index: 4, kind: input, shape index: {}]
  %s5 = inlined_call_operand.hbm [shape: f32[16,128], index: 5, kind: output, shape index: {}]
  %s6 = sld [smem:[#allocation0]]
  $region46: #{tpu_custom_call.1} parent=0
    _
  %s8 = ssub.s32 1, %s6
  %s9 = scalar_select 0, %s8, %s6
  %10 = sst [smem:[#allocation3]] %s0
  %11 = sst [smem:[#allocation4]] %s1
  $region1: #{tpu_custom_call.1} parent=0
    #allocation5 [shape = 'u8[8192]{0}', space=vmem, size = 0x2000, scoped, tag = 'input window, operand 2, single buffered']
    #allocation6 [shape = 's32[1]{0}', space=sflag, size = 0x4, scoped, tag = 'scoped memory for tpu_custom_call.1']
    #allocation7 [shape = 's32[1]{0}', space=sflag, size = 0x4, scoped, tag = 'scoped memory for tpu_custom_call.1']
    #allocation8 [shape = 'u8[65536]{0}', space=vmem, size = 0x10000, scoped, tag = 'input window, operand 3, single buffered']
    #allocation9 [shape = 's32[1]{0}', space=sflag, size = 0x4, scoped, tag = 'scoped memory for tpu_custom_call.1']
    #allocation10 [shape = 'u8[8192]{0}', space=vmem, size = 0x2000, scoped, tag = 'output window, operand 0, single buffered']
    %12 = vsyncpa [#allocation6], 0
    %13 = vsyncpa [#allocation9], 0
    %14 = vsyncpa [#allocation7], 0
    // Predicated region
    $region2: #{tpu_custom_call.1} parent=1 // pred_check
      _
    $region3: #{tpu_custom_call.1} parent=1 // pred_check_branch
      %16 = sbr.rel (0) target = $region5
    $region4: #{tpu_custom_call.1} parent=1 // pred_region
      _
    $region5: #{tpu_custom_call.1} parent=1 // pred_fallthru
      _
    // Predicated region
    $region6: #{tpu_custom_call.1} parent=1 // pred_check
      _
    $region7: #{tpu_custom_call.1} parent=1 // pred_check_branch
      %18 = sbr.rel (0) target = $region9
    $region8: #{tpu_custom_call.1} parent=1 // pred_region
      _
    $region9: #{tpu_custom_call.1} parent=1 // pred_fallthru
      _
    // Predicated region
    $region10: #{tpu_custom_call.1} parent=1 // pred_check
      _
    $region11: #{tpu_custom_call.1} parent=1 // pred_check_branch
      %20 = sbr.rel (0) target = $region13
    $region12: #{tpu_custom_call.1} parent=1 // pred_region
      %s22 = ssub.s32 256, 256
      %23 = vsyncadd [#allocation6], %s22
      %s24 = sshll.u32 [#allocation5], 4
      %s25 = int_to_ptr.vmem [resolvable:$true] %s24
      %30 = dma.hbm_to_vmem [thread:$0]  %s2, 256, %s25, [#allocation6], 128, 128, 8
    $region13: #{tpu_custom_call.1} parent=1 // pred_fallthru
      _
    // Predicated region
    $region14: #{tpu_custom_call.1} parent=1 // pred_check
      _
    $region15: #{tpu_custom_call.1} parent=1 // pred_check_branch
      %32 = sbr.rel (0) target = $region17
    $region16: #{tpu_custom_call.1} parent=1 // pred_region
      %s34 = ssub.s32 2048, 2048
      %35 = vsyncadd [#allocation9], %s34
      %s36 = sshll.u32 [#allocation8], 4
      %s37 = int_to_ptr.vmem [resolvable:$true] %s36
      %42 = dma.hbm_to_vmem [thread:$0]  %s3, 2048, %s37, [#allocation9], 128, 128, 8
    $region17: #{tpu_custom_call.1} parent=1 // pred_fallthru
      _
    // Predicated region
    $region18: #{tpu_custom_call.1} parent=1 // pred_check
      _
    $region19: #{tpu_custom_call.1} parent=1 // pred_check_branch
      %44 = sbr.rel (0) target = $region21
    $region20: #{tpu_custom_call.1} parent=1 // pred_region
      _
    $region21: #{tpu_custom_call.1} parent=1 // pred_fallthru
      _
    // Predicated region
    $region22: #{tpu_custom_call.1} parent=1 // pred_check
      _
    $region23: #{tpu_custom_call.1} parent=1 // pred_check_branch
      %46 = sbr.rel (0) target = $region25
    $region24: #{tpu_custom_call.1} parent=1 // pred_region
      %47 = dma.done [#allocation6], 256
    $region25: #{tpu_custom_call.1} parent=1 // pred_fallthru
      _
    // Predicated region
    $region26: #{tpu_custom_call.1} parent=1 // pred_check
      _
    $region27: #{tpu_custom_call.1} parent=1 // pred_check_branch
      %49 = sbr.rel (0) target = $region29
    $region28: #{tpu_custom_call.1} parent=1 // pred_region
      %50 = dma.done [#allocation9], 2048
    $region29: #{tpu_custom_call.1} parent=1 // pred_fallthru
      _
    %p51 = scmp.eq.s32.totalorder 0, 0
    // Predicated region
    $region30: #{tpu_custom_call.1} parent=1 // pred_check
      %p52 = pneg %p51
    $region31: #{tpu_custom_call.1} parent=1 // pred_check_branch
      %54 = sbr.rel (%p52) target = $region33
    $region32: #{tpu_custom_call.1} parent=1 // pred_region
      %55 = vst [vmem:[#allocation2] sm:$0xff] 0.0
      %56 = vst [vmem:[#allocation2 + $0x8] sm:$0xff] 0.0
    $region33: #{tpu_custom_call.1} parent=1 // pred_fallthru
      _
    %s57 = sld [smem:[#allocation3]]
    %s58 = sld [smem:[#allocation4]]
    %v59 = vld [vmem:[#allocation8] sm:$0xff]
    %v60 = vld [vmem:[#allocation8 + $0x8] sm:$0xff]
    %v61 = vld [vmem:[#allocation8 + $0x10] sm:$0xff]
    %v62 = vld [vmem:[#allocation8 + $0x18] sm:$0xff]
    %v63 = vld [vmem:[#allocation8 + $0x20] sm:$0xff]
    %v64 = vld [vmem:[#allocation8 + $0x28] sm:$0xff]
    %v65 = vld [vmem:[#allocation8 + $0x30] sm:$0xff]
    %v66 = vld [vmem:[#allocation8 + $0x38] sm:$0xff]
    %v67 = vld [vmem:[#allocation8 + $0x40] sm:$0xff]
    %v68 = vld [vmem:[#allocation8 + $0x48] sm:$0xff]
    %v69 = vld [vmem:[#allocation8 + $0x50] sm:$0xff]
    %v70 = vld [vmem:[#allocation8 + $0x58] sm:$0xff]
    %v71 = vld [vmem:[#allocation8 + $0x60] sm:$0xff]
    %v72 = vld [vmem:[#allocation8 + $0x68] sm:$0xff]
    %v73 = vld [vmem:[#allocation8 + $0x70] sm:$0xff]
    %v74 = vld [vmem:[#allocation8 + $0x78] sm:$0xff]
    %v75 = vstv %s57
    %v76 = vrcp.pop %v75
    %v77 = vmul.f32 %v59, %v76
    %v78 = vmul.f32 %v60, %v76
    %v79 = vmul.f32 %v61, %v76
    %v80 = vmul.f32 %v62, %v76
    %v81 = vmul.f32 %v63, %v76
    %v82 = vmul.f32 %v64, %v76
    %v83 = vmul.f32 %v65, %v76
    %v84 = vmul.f32 %v66, %v76
    %v85 = vmul.f32 %v67, %v76
    %v86 = vmul.f32 %v68, %v76
    %v87 = vmul.f32 %v69, %v76
    %v88 = vmul.f32 %v70, %v76
    %v89 = vmul.f32 %v71, %v76
    %v90 = vmul.f32 %v72, %v76
    %v91 = vmul.f32 %v73, %v76
    %v92 = vmul.f32 %v74, %v76
    %v93 = vstv %s58
    %v94 = vadd.f32 %v77, %v93
    %v95 = vadd.f32 %v78, %v93
    %v96 = vadd.f32 %v79, %v93
    %v97 = vadd.f32 %v80, %v93
    %v98 = vadd.f32 %v81, %v93
    %v99 = vadd.f32 %v82, %v93
    %v100 = vadd.f32 %v83, %v93
    %v101 = vadd.f32 %v84, %v93
    %v102 = vadd.f32 %v85, %v93
    %v103 = vadd.f32 %v86, %v93
    %v104 = vadd.f32 %v87, %v93
    %v105 = vadd.f32 %v88, %v93
    %v106 = vadd.f32 %v89, %v93
    %v107 = vadd.f32 %v90, %v93
    %v108 = vadd.f32 %v91, %v93
    %v109 = vadd.f32 %v92, %v93
    %v110 = vround.ne.pseudo %v94
    %v111 = vround.ne.pseudo %v95
    %v112 = vround.ne.pseudo %v96
    %v113 = vround.ne.pseudo %v97
    %v114 = vround.ne.pseudo %v98
    %v115 = vround.ne.pseudo %v99
    %v116 = vround.ne.pseudo %v100
    %v117 = vround.ne.pseudo %v101
    %v118 = vround.ne.pseudo %v102
    %v119 = vround.ne.pseudo %v103
    %v120 = vround.ne.pseudo %v104
    %v121 = vround.ne.pseudo %v105
    %v122 = vround.ne.pseudo %v106
    %v123 = vround.ne.pseudo %v107
    %v124 = vround.ne.pseudo %v108
    %v125 = vround.ne.pseudo %v109
    %v126 = vmax.f32 %v110, -8.0
    %v127 = vmax.f32 %v111, -8.0
    %v128 = vmax.f32 %v112, -8.0
    %v129 = vmax.f32 %v113, -8.0
    %v130 = vmax.f32 %v114, -8.0
    %v131 = vmax.f32 %v115, -8.0
    %v132 = vmax.f32 %v116, -8.0
    %v133 = vmax.f32 %v117, -8.0
    %v134 = vmax.f32 %v118, -8.0
    %v135 = vmax.f32 %v119, -8.0
    %v136 = vmax.f32 %v120, -8.0
    %v137 = vmax.f32 %v121, -8.0
    %v138 = vmax.f32 %v122, -8.0
    %v139 = vmax.f32 %v123, -8.0
    %v140 = vmax.f32 %v124, -8.0
    %v141 = vmax.f32 %v125, -8.0
    %v142 = vmin.f32 %v126, 7.0
    %v143 = vmin.f32 %v127, 7.0
    %v144 = vmin.f32 %v128, 7.0
    %v145 = vmin.f32 %v129, 7.0
    %v146 = vmin.f32 %v130, 7.0
    %v147 = vmin.f32 %v131, 7.0
    %v148 = vmin.f32 %v132, 7.0
    %v149 = vmin.f32 %v133, 7.0
    %v150 = vmin.f32 %v134, 7.0
    %v151 = vmin.f32 %v135, 7.0
    %v152 = vmin.f32 %v136, 7.0
    %v153 = vmin.f32 %v137, 7.0
    %v154 = vmin.f32 %v138, 7.0
    %v155 = vmin.f32 %v139, 7.0
    %v156 = vmin.f32 %v140, 7.0
    %v157 = vmin.f32 %v141, 7.0
    %v158 = vsub.f32 %v142, %v93
    %v159 = vsub.f32 %v143, %v93
    %v160 = vsub.f32 %v144, %v93
    %v161 = vsub.f32 %v145, %v93
    %v162 = vsub.f32 %v146, %v93
    %v163 = vsub.f32 %v147, %v93
    %v164 = vsub.f32 %v148, %v93
    %v165 = vsub.f32 %v149, %v93
    %v166 = vsub.f32 %v150, %v93
    %v167 = vsub.f32 %v151, %v93
    %v168 = vsub.f32 %v152, %v93
    %v169 = vsub.f32 %v153, %v93
    %v170 = vsub.f32 %v154, %v93
    %v171 = vsub.f32 %v155, %v93
    %v172 = vsub.f32 %v156, %v93
    %v173 = vsub.f32 %v157, %v93
    %v174 = vmul.f32 %v158, %v75
    %v175 = vmul.f32 %v159, %v75
    %v176 = vmul.f32 %v160, %v75
    %v177 = vmul.f32 %v161, %v75
    %v178 = vmul.f32 %v162, %v75
    %v179 = vmul.f32 %v163, %v75
    %v180 = vmul.f32 %v164, %v75
    %v181 = vmul.f32 %v165, %v75
    %v182 = vmul.f32 %v166, %v75
    %v183 = vmul.f32 %v167, %v75
    %v184 = vmul.f32 %v168, %v75
    %v185 = vmul.f32 %v169, %v75
    %v186 = vmul.f32 %v170, %v75
    %v187 = vmul.f32 %v171, %v75
    %v188 = vmul.f32 %v172, %v75
    %v189 = vmul.f32 %v173, %v75
    %v190 = vld [vmem:[#allocation5] sm:$0xff]
    %v191 = vld [vmem:[#allocation5 + $0x8] sm:$0xff]
    %v192 = vld [vmem:[#allocation2] sm:$0xff]
    %v193 = vld [vmem:[#allocation2 + $0x8] sm:$0xff]
    %194 = vmatprep.subr.mxu0 0.0
    %195 = vmatpush1.msra.mxu0 %v174
    %196 = vmatprep.subr.mxu0 0.0
    %197 = vmatpush1.msra.mxu0 %v175
    %198 = vmatprep.subr.mxu0 0.0
    %199 = vmatpush1.msra.mxu0 %v176
    %200 = vmatprep.subr.mxu0 0.0
    %201 = vmatpush1.msra.mxu0 %v177
    %202 = vmatprep.subr.mxu0 0.0
    %203 = vmatpush1.msra.mxu0 %v178
    %204 = vmatprep.subr.mxu0 0.0
    %205 = vmatpush1.msra.mxu0 %v179
    %206 = vmatprep.subr.mxu0 0.0
    %207 = vmatpush1.msra.mxu0 %v180
    %208 = vmatprep.subr.mxu0 0.0
    %209 = vmatpush1.msra.mxu0 %v181
    %210 = vmatprep.subr.mxu0 0.0
    %211 = vmatpush1.msra.mxu0 %v182
    %212 = vmatprep.subr.mxu0 0.0
    %213 = vmatpush1.msra.mxu0 %v183
    %214 = vmatprep.subr.mxu0 0.0
    %215 = vmatpush1.msra.mxu0 %v184
    %216 = vmatprep.subr.mxu0 0.0
    %217 = vmatpush1.msra.mxu0 %v185
    %218 = vmatprep.subr.mxu0 0.0
    %219 = vmatpush1.msra.mxu0 %v186
    %220 = vmatprep.subr.mxu0 0.0
    %221 = vmatpush1.msra.mxu0 %v187
    %222 = vmatprep.subr.mxu0 0.0
    %223 = vmatpush1.msra.mxu0 %v188
    %224 = vmatprep.subr.mxu0 0.0
    %225 = vmatpush1.msra.mxu0 %v189
    %226 = vmatprep.subr.mxu0 0.0
    %227 = vmatpush1.msra.mxu0 0.0
    %228 = vmatprep.subr.mxu0 0.0
    %229 = vmatpush1.msra.mxu0 0.0
    %230 = vmatprep.subr.mxu0 0.0
    %231 = vmatpush1.msra.mxu0 0.0
    %232 = vmatprep.subr.mxu0 0.0
    %233 = vmatpush1.msra.mxu0 0.0
    %234 = vmatprep.subr.mxu0 0.0
    %235 = vmatpush1.msra.mxu0 0.0
    %236 = vmatprep.subr.mxu0 0.0
    %237 = vmatpush1.msra.mxu0 0.0
    %238 = vmatprep.subr.mxu0 0.0
    %239 = vmatpush1.msra.mxu0 0.0
    %240 = vmatprep.subr.mxu0 0.0
    %241 = vmatpush1.msra.mxu0 0.0
    %242 = vmatprep.subr.mxu0 0.0
    %243 = vmatpush1.msra.mxu0 0.0
    %244 = vmatprep.subr.mxu0 0.0
    %245 = vmatpush1.msra.mxu0 0.0
    %246 = vmatprep.subr.mxu0 0.0
    %247 = vmatpush1.msra.mxu0 0.0
    %248 = vmatprep.subr.mxu0 0.0
    %249 = vmatpush1.msra.mxu0 0.0
    %250 = vmatprep.subr.mxu0 0.0
    %251 = vmatpush1.msra.mxu0 0.0
    %252 = vmatprep.subr.mxu0 0.0
    %253 = vmatpush1.msra.mxu0 0.0
    %254 = vmatprep.subr.mxu0 0.0
    %255 = vmatpush1.msra.mxu0 0.0
    %256 = vmatprep.subr.mxu0 0.0
    %257 = vmatpush1.msra.mxu0 0.0
    %258 = vmatprep.mubr.f32.mxu0 0.0
    %259 = vmatmul.mubr.f32.gmra.mrb[0].mxu0 %v190
    %v260 = vpop.f32.mrb[0].mxu0
    %v261 = vadd.f32 0.0, %v260
    %v262 = vpop.f32.mrb[0].mxu0
    %263 = vmatprep.mubr.f32.mxu0 0.0
    %264 = vmatmul.mubr.f32.gmra.mrb[0].mxu0 %v191
    %v265 = vpop.f32.mrb[0].mxu0
    %v266 = vadd.f32 0.0, %v265
    %v267 = vpop.f32.mrb[0].mxu0
    %268 = vdwg.mxu0
    %v269 = vadd.f32 %v192, %v261
    %v270 = vadd.f32 %v193, %v266
    %271 = vst [vmem:[#allocation2] sm:$0xff] %v269
    %272 = vst [vmem:[#allocation2 + $0x8] sm:$0xff] %v270
    // Predicated region
    $region34: #{tpu_custom_call.1} parent=1 // pred_check
      %p273 = pneg %p51
    $region35: #{tpu_custom_call.1} parent=1 // pred_check_branch
      %275 = sbr.rel (%p273) target = $region37
    $region36: #{tpu_custom_call.1} parent=1 // pred_region
      %v276 = vld [vmem:[#allocation2] sm:$0xff]
      %v277 = vld [vmem:[#allocation2 + $0x8] sm:$0xff]
      %v278 = vld [vmem:[%s4] sm:$0x1]
      %v280 = vlaneseq
      %v281 = vshrl.u32 %v280, 7
      %v282 = vsub.s32 0, %v281
      %v283 = vrot.slane %v278, %v282
      %v285 = vadd.f32 %v276, %v283
      %v286 = vadd.f32 %v277, %v283
      %287 = vst [vmem:[#allocation10] sm:$0xff] %v285
      %288 = vst [vmem:[#allocation10 + $0x8] sm:$0xff] %v286
    $region37: #{tpu_custom_call.1} parent=1 // pred_fallthru
      _
    // Predicated region
    $region38: #{tpu_custom_call.1} parent=1 // pred_check
      _
    $region39: #{tpu_custom_call.1} parent=1 // pred_check_branch
      %290 = sbr.rel (0) target = $region41
    $region40: #{tpu_custom_call.1} parent=1 // pred_region
      %s292 = ssub.s32 256, 256
      %293 = vsyncadd [#allocation7], %s292
      %s294 = sshll.u32 [#allocation10], 4
      %s295 = int_to_ptr.vmem [resolvable:$true] %s294
      %300 = dma.vmem_to_hbm [thread:$0]  %s295, 256, %s5, [#allocation7], 128, 128, 8
    $region41: #{tpu_custom_call.1} parent=1 // pred_fallthru
      _
    // Predicated region
    $region42: #{tpu_custom_call.1} parent=1 // pred_check
      _
    $region43: #{tpu_custom_call.1} parent=1 // pred_check_branch
      %302 = sbr.rel (0) target = $region45
    $region44: #{tpu_custom_call.1} parent=1 // pred_region
      %303 = dma.done [#allocation7], 256
    $region45: #{tpu_custom_call.1} parent=1 // pred_fallthru
      _
    %304 = vsyncpa [#allocation6], 1
    %305 = vsyncpa [#allocation9], 1
    %306 = vsyncpa [#allocation7], 1

</llo_original>
